<compile_context>
chip_gen: v7x
topology: tpu7x:2x2x1
jax: 0.10.0
libtpu: 0.0.40
codegen_flags: <defaults>
</compile_context>

<pallas_src>
import functools

import jax
import jax.numpy as jnp
from jax.experimental import pallas as pl
from jax.experimental.pallas import tpu as pltpu


_SEQ_TILE_TARGET_BYTES = 2 * 1024 * 1024   # target f32-padded x block per grid step
_VMEM_LIMIT_BYTES = 48 * 1024 * 1024       # > v5e's 16 MiB default, < v7x's 64 MiB physical


def _round_up(x, m):
    return -(-x // m) * m


# ---------------------------------------------------------------------------
# Kernels
# ---------------------------------------------------------------------------
def _rope_interleaved_kernel(x_ref, cos_ref, sin_ref, o_ref, *, num_heads):
    """Interleaved RoPE on a lane-flattened block.

    x_ref / o_ref : (tS, H*D)  -- heads folded into the lane axis (lane-dense I/O)
    cos_ref/sin_ref: (tS, D)   -- per-lane tables, sin sign already folded in
    """
    x = x_ref[...].astype(jnp.float32)
    cos = cos_ref[...].astype(jnp.float32)
    sin = sin_ref[...].astype(jnp.float32)
    if num_heads > 1:
        # Widen the D-wide tables to H*D lanes in VMEM (lane concatenation) instead of
        # streaming H duplicated copies from HBM.  value at lane c == table[c % D].
        cos = jnp.concatenate([cos] * num_heads, axis=-1)
        sin = jnp.concatenate([sin] * num_heads, axis=-1)
    w = x.shape[-1]
    # Lane parity from a tiny (1, W) iota (broadcast over rows): even lanes pair with
    # lane d+1, odd lanes with lane d-1.
    lane = jax.lax.broadcasted_iota(jnp.int32, (1, w), 1)
    is_even = (lane & 1) == 0
    # Pair partner x[d ^ 1].  NOTE (load-bearing): the roll wrap-around lanes (0 and
    # W-1) and the head-boundary lanes are never *selected* -- even lanes take x_next
    # (same pair), odd lanes take x_prev (same pair), and head_dim is even so pairs
    # never straddle a head boundary of the flattened lane axis.
    x_next = jnp.roll(x, shift=-1, axis=-1)   # x[d+1] at lane d
    x_prev = jnp.roll(x, shift=1, axis=-1)    # x[d-1] at lane d
    partner = jnp.where(is_even, x_next, x_prev)
    o_ref[...] = (x * cos + partner * sin).astype(o_ref.dtype)


def _rope_half_flipped_kernel(x_ref, cos_ref, sin_ref, o_ref, *, head_dim):
    """Half-flipped (Llama-style) RoPE.

    x_ref / o_ref : (tS, H, D);  cos_ref / sin_ref : (tS, D), sin sign folded in.
    """
    x = x_ref[...].astype(jnp.float32)
    cos = cos_ref[...].astype(jnp.float32)[:, None, :]
    sin = sin_ref[...].astype(jnp.float32)[:, None, :]
    # Partner of lane d is lane d +/- D/2.  A single roll by D/2 suffices because D is
    # even, so the shift is symmetric modulo D (load-bearing fact).
    partner = jnp.roll(x, shift=head_dim // 2, axis=-1)
    o_ref[...] = (x * cos + partner * sin).astype(o_ref.dtype)


# ---------------------------------------------------------------------------
# Module
# ---------------------------------------------------------------------------
class RotaryPositionalEmbedding:
    """JAX/Pallas port of the PyTorch RotaryPositionalEmbedding forward pass."""

    def __init__(self, dim: int, max_seq_len: int, base: int = 10000,
                 interleaved: bool = True, seq_tile: int | None = None):
        if dim <= 0:
            raise ValueError(f"dim must be positive, got {dim}")
        if dim % 2 != 0:
            raise ValueError(f"dim must be even, got {dim}")
        if max_seq_len < 0:
            raise ValueError(f"max_seq_len must be non-negative, got {max_seq_len}")
        if base <= 0:
            raise ValueError(f"base must be positive, got {base}")
        self.dim = dim
        self.max_seq_len = max_seq_len
        self.base = base
        self.interleaved = interleaved
        self.seq_tile = seq_tile  # optional explicit sequence-tile rows (None = auto)

        # cache build (same math as the PyTorch _build_cache, all in f32)
        freq_idx = jnp.arange(0, dim, 2, dtype=jnp.float32)
        theta = jnp.float32(base) ** (-freq_idx / jnp.float32(dim))   # (dim//2,)
        pos = jnp.arange(max_seq_len, dtype=jnp.float32)
        angles = pos[:, None] * theta[None, :]                        # (L, dim//2)
        self.cos_half = jnp.cos(angles)
        self.sin_half = jnp.sin(angles)

    # ---- tiling helpers ---------------------------------------------------
    def _pick_seq_tile(self, seq_len, padded_row_bytes):
        if self.seq_tile is not None:
            ts = min(int(self.seq_tile), seq_len)
        else:
            ts = _SEQ_TILE_TARGET_BYTES // max(int(padded_row_bytes), 1)
            ts = min(ts, 2048)
        if ts >= seq_len:
            return seq_len                 # full-extent block is always legal
        return max(8, (ts // 8) * 8)       # keep the sublane (8) constraint otherwise

    def _compiler_params(self):
        return pltpu.CompilerParams(
            dimension_semantics=("parallel", "parallel"),
            vmem_limit_bytes=_VMEM_LIMIT_BYTES)

    # ---- pallas_call wrappers ---------------------------------------------
    def _apply_interleaved(self, x_flat, cos, sin, per_batch_tables, num_heads):
        B, S, W = x_flat.shape
        D = self.dim
        padded_row = _round_up(W, 128) * 4               # f32-padded bytes per seq row
        ts = self._pick_seq_tile(S, padded_row)
        grid = (B, pl.cdiv(S, ts))
        x_spec = pl.BlockSpec((None, ts, W), lambda b, s: (b, s, 0))
        if per_batch_tables:
            tab_spec = pl.BlockSpec((None, ts, D), lambda b, s: (b, s, 0))
        else:
            # shared table: the batch coordinate is ignored -> no B-fold table traffic
            tab_spec = pl.BlockSpec((ts, D), lambda b, s: (s, 0))
        kernel = functools.partial(_rope_interleaved_kernel, num_heads=num_heads)
        return pl.pallas_call(
            kernel,
            out_shape=jax.ShapeDtypeStruct((B, S, W), x_flat.dtype),
            grid=grid,
            in_specs=[x_spec, tab_spec, tab_spec],
            out_specs=pl.BlockSpec((None, ts, W), lambda b, s: (b, s, 0)),
            compiler_params=self._compiler_params(),
        )(x_flat, cos, sin)

    def _apply_half_flipped(self, x, cos, sin, per_batch_tables):
        B, S, H, D = x.shape
        padded_row = _round_up(H, 8) * _round_up(D, 128) * 4
        ts = self._pick_seq_tile(S, padded_row)
        grid = (B, pl.cdiv(S, ts))
        x_spec = pl.BlockSpec((None, ts, H, D), lambda b, s: (b, s, 0, 0))
        if per_batch_tables:
            tab_spec = pl.BlockSpec((None, ts, D), lambda b, s: (b, s, 0))
        else:
            tab_spec = pl.BlockSpec((ts, D), lambda b, s: (s, 0))
        kernel = functools.partial(_rope_half_flipped_kernel, head_dim=D)
        return pl.pallas_call(
            kernel,
            out_shape=jax.ShapeDtypeStruct((B, S, H, D), x.dtype),
            grid=grid,
            in_specs=[x_spec, tab_spec, tab_spec],
            out_specs=pl.BlockSpec((None, ts, H, D), lambda b, s: (b, s, 0, 0)),
            compiler_params=self._compiler_params(),
        )(x, cos, sin)

    # ---- forward ------------------------------------------------------------
    def __call__(self, x, *, input_pos=None):
        if x.ndim != 4:
            raise ValueError(f"x must be a 4D tensor, got {x.ndim}D")
        B, S, H, D = x.shape
        if D != self.dim:
            raise ValueError(f"x.shape[-1] must match dim, got {D} and {self.dim}")
        if S > self.max_seq_len:
            raise ValueError("seq_len out of bounds, must be <= max_seq_len")
        if S == 0:
            return x

        per_batch = input_pos is not None
        if per_batch:
            input_pos = jnp.asarray(input_pos)
            if jnp.issubdtype(input_pos.dtype, jnp.floating):
                raise ValueError(f"input_pos must be an integer tensor, got {input_pos.dtype}")
            # TODO(synk): PyTorch's runtime IndexError for negative input_pos has no clean
            # traced-value equivalent here and is skipped.
            positions = jnp.broadcast_to(input_pos.astype(jnp.int32), (B, S))
            cos_h = self.cos_half[positions]          # (B, S, D//2)
            sin_h = self.sin_half[positions]
        else:
            cos_h = self.cos_half[:S]                 # (S, D//2) shared across batch
            sin_h = self.sin_half[:S]

        if self.interleaved:
            # per-lane tables: cos_full[d] = cos[d//2]; sign folded into sin:
            #   even lane d -> -sin[d//2], odd lane d -> +sin[d//2]
            cos_full = jnp.repeat(cos_h, 2, axis=-1)
            sin_full = jnp.repeat(sin_h, 2, axis=-1)
            sign = jnp.where(jnp.arange(D) % 2 == 0, -1.0, 1.0).astype(jnp.float32)
        else:
            # half-flipped: cos_full[d] = cos[d mod D/2]; sign -1 on first half, +1 on second
            cos_full = jnp.concatenate([cos_h, cos_h], axis=-1)
            sin_full = jnp.concatenate([sin_h, sin_h], axis=-1)
            sign = jnp.where(jnp.arange(D) < D // 2, -1.0, 1.0).astype(jnp.float32)
        sin_signed = sin_full * sign
        # Narrow the tables to x's dtype (halves table HBM traffic for bf16 inputs);
        # the rotation math runs in f32 inside the kernel.
        cos_full = cos_full.astype(x.dtype)
        sin_signed = sin_signed.astype(x.dtype)

        if self.interleaved:
            # Fold heads into the lane axis (free contiguous reshape) so blocks are
            # lane-dense even when head_dim < 128.
            x_flat = x.reshape(B, S, H * D)
            out = self._apply_interleaved(x_flat, cos_full, sin_signed, per_batch, H)
            return out.reshape(B, S, H, D)
        return self._apply_half_flipped(x, cos_full, sin_signed, per_batch)


# ---------------------------------------------------------------------------
# Pure-JAX reference (literal translation of the PyTorch forward) for checking.
# ---------------------------------------------------------------------------
def rope_reference(x, rope, *, input_pos=None):
    B, S, H, D = x.shape
    if input_pos is None:
        positions = jnp.broadcast_to(jnp.arange(S, dtype=jnp.int32)[None, :], (B, S))
    else:
        positions = jnp.broadcast_to(jnp.asarray(input_pos, jnp.int32), (B, S))
    cos = rope.cos_half[positions][:, :, None, :]   # (B, S, 1, D//2)
    sin = rope.sin_half[positions][:, :, None, :]
    xf = x.astype(jnp.float32)
    if rope.interleaved:
        xp = xf.reshape(B, S, H, D // 2, 2)
        x_odd, x_even = xp[..., 0], xp[..., 1]
        out_odd = x_odd * cos - x_even * sin
        out_even = x_odd * sin + x_even * cos
        out = jnp.stack([out_odd, out_even], axis=-1).reshape(B, S, H, D)
    else:
        x1, x2 = jnp.split(xf, 2, axis=-1)
        rot = jnp.concatenate([-x2, x1], axis=-1)
        cos_d = jnp.concatenate([cos, cos], axis=-1)
        sin_d = jnp.concatenate([sin, sin], axis=-1)
        out = xf * cos_d + rot * sin_d
    return out.astype(x.dtype)


if __name__ == "__main__":
    key = jax.random.PRNGKey(0)
    ok = True

    def check(rope, x, pos, atol, rtol):
        out = jax.block_until_ready(rope(x, input_pos=pos))
        ref = rope_reference(x, rope, input_pos=pos)
        good = (out.shape == x.shape and out.dtype == x.dtype and
                jnp.allclose(out.astype(jnp.float32), ref.astype(jnp.float32),
                             atol=atol, rtol=rtol))
        return bool(good)

    # Case 1: small f32 (exact-math check), both modes, with and without input_pos.
    B, S, H, D = 2, 8, 4, 32
    max_seq_len = 16
    k1, k2, key = jax.random.split(key, 3)
    x = jax.random.normal(k1, (B, S, H, D), dtype=jnp.float32)
    pos = jax.random.randint(k2, (B, S), 0, max_seq_len, dtype=jnp.int32)
    for interleaved in (True, False):
        rope = RotaryPositionalEmbedding(D, max_seq_len, interleaved=interleaved)
        for p in (None, pos):
            ok &= check(rope, x, p, 1e-5, 1e-5)

    # Case 2: bf16, D=128, multi-tile sequence (forced small seq tile), both modes,
    # shared-table and per-batch-table paths.
    B, S, H, D = 2, 48, 8, 128
    max_seq_len = 64
    k1, k2, key = jax.random.split(key, 3)
    x = jax.random.normal(k1, (B, S, H, D)).astype(jnp.bfloat16)
    pos = jax.random.randint(k2, (B, S), 0, max_seq_len, dtype=jnp.int32)
    for interleaved in (True, False):
        rope = RotaryPositionalEmbedding(D, max_seq_len, interleaved=interleaved,
                                         seq_tile=16)
        for p in (None, pos):
            ok &= check(rope, x, p, 5e-2, 5e-2)

    # Case 3: f32, sequence length not divisible by the tile (exercises padded edge blocks).
    B, S, H, D = 1, 20, 8, 64
    max_seq_len = 32
    k1, key = jax.random.split(key)
    x = jax.random.normal(k1, (B, S, H, D), dtype=jnp.float32)
    for interleaved in (True, False):
        rope = RotaryPositionalEmbedding(D, max_seq_len, interleaved=interleaved,
                                         seq_tile=8)
        ok &= check(rope, x, None, 1e-5, 1e-5)

    print("KERNEL_OK" if ok else "KERNEL_MISMATCH")
</pallas_src>

<mosaic_0001>
module attributes {stable_mosaic.version = 11 : i64} {
  func.func @_rope_interleaved_kernel(%arg0: i32, %arg1: i32, %arg2: memref<1x8x128xf32, #tpu.memory_space<vmem>>, %arg3: memref<8x32xf32, #tpu.memory_space<vmem>>, %arg4: memref<8x32xf32, #tpu.memory_space<vmem>>, %arg5: memref<1x8x128xf32, #tpu.memory_space<vmem>>) attributes {dimension_semantics = [#tpu.dimension_semantics<parallel>, #tpu.dimension_semantics<parallel>], iteration_bounds = array<i64: 2, 1>, scalar_prefetch = 0 : i64, scratch_operands = 0 : i64, tpu.core_type = #tpu.core_type<tc>, window_params = [{transform_indices = @transform_0, window_bounds = array<i64: 1, 8, 128>}, {transform_indices = @transform_1, window_bounds = array<i64: 8, 32>}, {transform_indices = @transform_2, window_bounds = array<i64: 8, 32>}, {transform_indices = @transform_3, window_bounds = array<i64: 1, 8, 128>}]} {
    %c0 = arith.constant 0 : index
    %c0_0 = arith.constant 0 : index
    %c0_1 = arith.constant 0 : index
    %0 = vector.load %arg2[%c0, %c0_0, %c0_1] : memref<1x8x128xf32, #tpu.memory_space<vmem>>, vector<1x8x128xf32>
    %1 = vector.shape_cast %0 : vector<1x8x128xf32> to vector<8x128xf32>
    %c0_2 = arith.constant 0 : index
    %c0_3 = arith.constant 0 : index
    %2 = vector.load %arg3[%c0_2, %c0_3] : memref<8x32xf32, #tpu.memory_space<vmem>>, vector<8x32xf32>
    %c0_4 = arith.constant 0 : index
    %c0_5 = arith.constant 0 : index
    %3 = vector.load %arg4[%c0_4, %c0_5] : memref<8x32xf32, #tpu.memory_space<vmem>>, vector<8x32xf32>
    %4 = tpu.concatenate %2, %2, %2, %2 in 1 : vector<8x32xf32>, vector<8x32xf32>, vector<8x32xf32>, vector<8x32xf32> -> vector<8x128xf32>
    %5 = tpu.concatenate %3, %3, %3, %3 in 1 : vector<8x32xf32>, vector<8x32xf32>, vector<8x32xf32>, vector<8x32xf32> -> vector<8x128xf32>
    %6 = tpu.iota {dimensions = array<i32: 1>} : vector<1x128xi32>
    %c1_i32 = arith.constant 1 : i32
    %7 = vector.broadcast %c1_i32 : i32 to vector<1x128xi32>
    %8 = arith.andi %6, %7 : vector<1x128xi32>
    %c0_i32 = arith.constant 0 : i32
    %9 = vector.broadcast %c0_i32 : i32 to vector<1x128xi32>
    %10 = arith.cmpi eq, %8, %9 : vector<1x128xi32>
    %11 = vector.extract_strided_slice %1 {offsets = [0, 1], sizes = [8, 127], strides = [1, 1]} : vector<8x128xf32> to vector<8x127xf32>
    %12 = vector.extract_strided_slice %1 {offsets = [0, 0], sizes = [8, 1], strides = [1, 1]} : vector<8x128xf32> to vector<8x1xf32>
    %13 = tpu.concatenate %11, %12 in 1 : vector<8x127xf32>, vector<8x1xf32> -> vector<8x128xf32>
    %14 = vector.extract_strided_slice %1 {offsets = [0, 127], sizes = [8, 1], strides = [1, 1]} : vector<8x128xf32> to vector<8x1xf32>
    %15 = vector.extract_strided_slice %1 {offsets = [0, 0], sizes = [8, 127], strides = [1, 1]} : vector<8x128xf32> to vector<8x127xf32>
    %16 = tpu.concatenate %14, %15 in 1 : vector<8x1xf32>, vector<8x127xf32> -> vector<8x128xf32>
    %17 = vector.shape_cast %10 : vector<1x128xi1> to vector<1x128xi1>
    %18 = vector.broadcast %17 : vector<1x128xi1> to vector<8x128xi1>
    %19 = arith.select %18, %13, %16 : vector<8x128xi1>, vector<8x128xf32>
    %20 = arith.mulf %1, %4 : vector<8x128xf32>
    %21 = arith.mulf %19, %5 : vector<8x128xf32>
    %22 = arith.addf %20, %21 : vector<8x128xf32>
    %c0_6 = arith.constant 0 : index
    %c0_7 = arith.constant 0 : index
    %c0_8 = arith.constant 0 : index
    %23 = vector.load %arg5[%c0_6, %c0_7, %c0_8] : memref<1x8x128xf32, #tpu.memory_space<vmem>>, vector<1x8x128xf32>
    %24 = vector.shape_cast %23 : vector<1x8x128xf32> to vector<8x128xf32>
    %25 = vector.shape_cast %22 : vector<8x128xf32> to vector<1x8x128xf32>
    tpu.vector_store %arg5[%c0_6, %c0_7, %c0_8], %25 {strides = array<i32>} : memref<1x8x128xf32, #tpu.memory_space<vmem>>, vector<1x8x128xf32>,
    return
  }
  func.func @transform_0(%arg0: i32, %arg1: i32) -> (i32, i32, i32) {
    %c0_i32 = arith.constant 0 : i32
    %c0_i32_0 = arith.constant 0 : i32
    return %arg0, %arg1, %c0_i32 : i32, i32, i32
  }
  func.func @transform_1(%arg0: i32, %arg1: i32) -> (i32, i32) {
    %c0_i32 = arith.constant 0 : i32
    %c0_i32_0 = arith.constant 0 : i32
    return %arg1, %c0_i32 : i32, i32
  }
  func.func @transform_2(%arg0: i32, %arg1: i32) -> (i32, i32) {
    %c0_i32 = arith.constant 0 : i32
    %c0_i32_0 = arith.constant 0 : i32
    return %arg1, %c0_i32 : i32, i32
  }
  func.func @transform_3(%arg0: i32, %arg1: i32) -> (i32, i32, i32) {
    %c0_i32 = arith.constant 0 : i32
    %c0_i32_0 = arith.constant 0 : i32
    return %arg0, %arg1, %c0_i32 : i32, i32, i32
  }
}

</mosaic_0001>

<llo_original>
// kernel: tpu_custom_call.1
$region0: #{tpu_custom_call.1}
  #allocation0 [shape = 'u32[]', space=smem, size = 0x4, offset = 0x4, fixed_abs, tag = 'smem constant byte address 0x4 - core index']
  #allocation1 [shape = 'u32[144,128]{1,0:T(1,128)}', space=vmem, size = 0x12000, scoped, tag = 'internal scratch']
  %s0 = inlined_call_operand.hbm [shape: f32[2,8,128], index: 0, kind: input, shape index: {}]
  %s1 = inlined_call_operand.hbm [shape: f32[8,32], index: 1, kind: input, shape index: {}]
  %s2 = inlined_call_operand.hbm [shape: f32[8,32], index: 2, kind: input, shape index: {}]
  %s3 = inlined_call_operand.hbm [shape: f32[2,8,128], index: 3, kind: output, shape index: {}]
  %s4 = sld [smem:[#allocation0]]
  $region57: #{tpu_custom_call.1} parent=0
    _
  %s6 = ssub.s32 1, %s4
  %s7 = scalar_select 0, %s6, %s4
  $region1: #{tpu_custom_call.1} parent=0
    #allocation2 [shape = 'u8[8192]{0}', space=vmem, size = 0x2000, scoped, tag = 'input window, operand 0']
    #allocation3 [shape = 's32[2]{0}', space=sflag, size = 0x8, scoped, tag = 'scoped memory for tpu_custom_call.1']
    #allocation4 [shape = 's32[2]{0}', space=sflag, size = 0x8, scoped, tag = 'scoped memory for tpu_custom_call.1']
    #allocation5 [shape = 'u8[4096]{0}', space=vmem, size = 0x1000, scoped, tag = 'input window, operand 1, single buffered']
    #allocation6 [shape = 's32[1]{0}', space=sflag, size = 0x4, scoped, tag = 'scoped memory for tpu_custom_call.1']
    #allocation7 [shape = 'u8[4096]{0}', space=vmem, size = 0x1000, scoped, tag = 'input window, operand 2, single buffered']
    #allocation8 [shape = 'u8[8192]{0}', space=vmem, size = 0x2000, scoped, tag = 'output window, operand 0']
    %8 = vsyncpa [#allocation3], 0
    %s9 = scalar_lea.sflag [#allocation3], 1
    %10 = vsyncpa %s9, 0
    %11 = vsyncpa [#allocation6], 0
    %12 = vsyncpa [#allocation4], 0
    %s13 = scalar_lea.sflag [#allocation4], 1
    %14 = vsyncpa %s13, 0
    loop: start=0, step=1, limit=4
    $region2: #{tpu_custom_call.1} parent=1 // loop_pre_header
      _
    $region3: #{tpu_custom_call.1} parent=1 // loop_header
      %s16 = sphi 0, %s20
      %p17 = scmp.ge.s32.totalorder %s16, 4
      %s23 = sphi 0, %s35
      %s24 = sphi 0, %s31
      %s25 = sphi 0, %s23
      %s26 = sphi 0, %s24
      %s27 = sphi 0, %s25
      %s28 = sphi 0, %s26
      %s40 = sphi 0, %s42
      %s43 = sphi 0, %s40
      %s44 = sphi 0, %s43
      %s60 = sphi 0, %s44
      %s66 = sphi 0, %s68
      %s69 = sphi 0, %s66
      %s70 = sphi 0, %s69
      %s86 = sphi 0, %s70
      %s92 = sphi 0, %s94
      %s95 = sphi 0, %s92
      %s96 = sphi 0, %s95
      %s112 = sphi 0, %s96
      %s120 = sphi 0, %s122
      %s123 = sphi 0, %s120
      %s124 = sphi 0, %s123
      %s140 = sphi 0, %s124
    $region4: #{tpu_custom_call.1} parent=1 // loop_header_branch
      %19 = sbr.rel (%p17) target = $region8
    $region5: #{tpu_custom_call.1} parent=1 // loop_body
      %s21 = ssub.s32 %s16, 1
      %s22 = ssub.s32 %s16, 2
      %s29 = sadd.s32 1, %s24
      %p30 = scmp.ge.s32.totalorder %s29, 1
      %s31 = scalar_select %p30, 0, %s29
      %s32 = sadd.s32 1, %s23
      %s33 = scalar_select %p30, %s32, %s23
      %p34 = scmp.ge.s32.totalorder %s33, 2
      %s35 = scalar_select %p34, 0, %s33
      %s36 = ssub.s32 %s23, %s35
      %s37 = ssub.s32 %s24, %s31
      %s38 = sor.u32 %s36, %s37
      %p39 = scmp.eq.s32.totalorder %s38, 0
      %s41 = sadd.s32 %s40, 1
      %s42 = scalar_select %p39, %s40, %s41
      %p45 = pneg %p39
      %p46 = scmp.eq.s32.totalorder %s16, 1
      %p47 = por %p45, %p46
      %p48 = scmp.ne.s32.totalorder %s40, %s43
      %p49 = scmp.eq.s32.totalorder %s16, 0
      %p50 = por %p48, %p49
      %p51 = scmp.ne.s32.totalorder %s40, %s43
      %p52 = scmp.eq.s32.totalorder %s21, 1
      %p53 = por %p51, %p52
      %p54 = scmp.ne.s32.totalorder %s43, %s44
      %p55 = scmp.eq.s32.totalorder %s21, 0
      %p56 = por %p54, %p55
      %p57 = scmp.ne.s32.totalorder %s43, %s44
      %p58 = scmp.eq.s32.totalorder %s22, 1
      %p59 = por %p57, %p58
      %p61 = scmp.ne.s32.totalorder %s44, %s60
      %p62 = scmp.eq.s32.totalorder %s22, 0
      %p63 = por %p61, %p62
      %s64 = ssub.s32 %s24, %s31
      %p65 = scmp.eq.s32.totalorder %s64, 0
      %s67 = sadd.s32 %s66, 1
      %s68 = scalar_select %p65, %s66, %s67
      %p71 = pneg %p65
      %p72 = scmp.eq.s32.totalorder %s16, 1
      %p73 = por %p71, %p72
      %p74 = scmp.ne.s32.totalorder %s66, %s69
      %p75 = scmp.eq.s32.totalorder %s16, 0
      %p76 = por %p74, %p75
      %p77 = scmp.ne.s32.totalorder %s66, %s69
      %p78 = scmp.eq.s32.totalorder %s21, 1
      %p79 = por %p77, %p78
      %p80 = scmp.ne.s32.totalorder %s69, %s70
      %p81 = scmp.eq.s32.totalorder %s21, 0
      %p82 = por %p80, %p81
      %p83 = scmp.ne.s32.totalorder %s69, %s70
      %p84 = scmp.eq.s32.totalorder %s22, 1
      %p85 = por %p83, %p84
      %p87 = scmp.ne.s32.totalorder %s70, %s86
      %p88 = scmp.eq.s32.totalorder %s22, 0
      %p89 = por %p87, %p88
      %s90 = ssub.s32 %s24, %s31
      %p91 = scmp.eq.s32.totalorder %s90, 0
      %s93 = sadd.s32 %s92, 1
      %s94 = scalar_select %p91, %s92, %s93
      %p97 = pneg %p91
      %p98 = scmp.eq.s32.totalorder %s16, 1
      %p99 = por %p97, %p98
      %p100 = scmp.ne.s32.totalorder %s92, %s95
      %p101 = scmp.eq.s32.totalorder %s16, 0
      %p102 = por %p100, %p101
      %p103 = scmp.ne.s32.totalorder %s92, %s95
      %p104 = scmp.eq.s32.totalorder %s21, 1
      %p105 = por %p103, %p104
      %p106 = scmp.ne.s32.totalorder %s95, %s96
      %p107 = scmp.eq.s32.totalorder %s21, 0
      %p108 = por %p106, %p107
      %p109 = scmp.ne.s32.totalorder %s95, %s96
      %p110 = scmp.eq.s32.totalorder %s22, 1
      %p111 = por %p109, %p110
      %p113 = scmp.ne.s32.totalorder %s96, %s112
      %p114 = scmp.eq.s32.totalorder %s22, 0
      %p115 = por %p113, %p114
      %s116 = ssub.s32 %s23, %s35
      %s117 = ssub.s32 %s24, %s31
      %s118 = sor.u32 %s116, %s117
      %p119 = scmp.eq.s32.totalorder %s118, 0
      %s121 = sadd.s32 %s120, 1
      %s122 = scalar_select %p119, %s120, %s121
      %p125 = pneg %p119
      %p126 = scmp.eq.s32.totalorder %s16, 1
      %p127 = por %p125, %p126
      %p128 = scmp.ne.s32.totalorder %s120, %s123
      %p129 = scmp.eq.s32.totalorder %s16, 0
      %p130 = por %p128, %p129
      %p131 = scmp.ne.s32.totalorder %s120, %s123
      %p132 = scmp.eq.s32.totalorder %s21, 1
      %p133 = por %p131, %p132
      %p134 = scmp.ne.s32.totalorder %s123, %s124
      %p135 = scmp.eq.s32.totalorder %s21, 0
      %p136 = por %p134, %p135
      %p137 = scmp.ne.s32.totalorder %s123, %s124
      %p138 = scmp.eq.s32.totalorder %s22, 1
      %p139 = por %p137, %p138
      %p141 = scmp.ne.s32.totalorder %s124, %s140
      %p142 = scmp.eq.s32.totalorder %s22, 0
      %p143 = por %p141, %p142
      %p144 = scmp.le.s32.totalorder 1, %s16
      %p145 = scmp.lt.s32.totalorder %s16, 3
      %p146 = pnand %p144, %p145
      %p147 = pneg %p146
      // Predicated region
      $region9: #{tpu_custom_call.1} parent=5 // pred_check
        _
      $region10: #{tpu_custom_call.1} parent=5 // pred_check_branch
        %149 = sbr.rel (%p146) target = $region12
      $region11: #{tpu_custom_call.1} parent=5 // pred_region
        %s150 = ssub.s32 %s16, 1
        // Predicated region
        $region13: #{tpu_custom_call.1} parent=11 // pred_check
          %p151 = pneg %p82
        $region14: #{tpu_custom_call.1} parent=11 // pred_check_branch
          %153 = sbr.rel (%p151) target = $region16
        $region15: #{tpu_custom_call.1} parent=11 // pred_region
          %s155 = ssub.s32 128, 128
          %156 = vsyncadd [#allocation6], %s155
          %s157 = smul.addr %s26, 128
          %s158 = scalar_lea.hbm %s1, %s157
          %s160 = sshll.u32 [#allocation5], 4
          %s161 = int_to_ptr.vmem [resolvable:$true] %s160
          %163 = dma.hbm_to_vmem [thread:$0]  %s158, 128, %s161, [#allocation6]
        $region16: #{tpu_custom_call.1} parent=11 // pred_fallthru
          _
        // Predicated region
        $region17: #{tpu_custom_call.1} parent=11 // pred_check
          %p164 = pneg %p108
        $region18: #{tpu_custom_call.1} parent=11 // pred_check_branch
          %166 = sbr.rel (%p164) target = $region20
        $region19: #{tpu_custom_call.1} parent=11 // pred_region
          %s168 = ssub.s32 128, 128
          %169 = vsyncadd [#allocation6], %s168
          %s170 = smul.addr %s26, 128
          %s171 = scalar_lea.hbm %s2, %s170
          %s173 = sshll.u32 [#allocation7], 4
          %s174 = int_to_ptr.vmem [resolvable:$true] %s173
          %176 = dma.hbm_to_vmem [thread:$0]  %s171, 128, %s174, [#allocation6]
        $region20: #{tpu_custom_call.1} parent=11 // pred_fallthru
          _
      $region12: #{tpu_custom_call.1} parent=5 // pred_fallthru
        _
      %p177 = scmp.lt.s32.totalorder %s16, 2
      // Predicated region
      $region21: #{tpu_custom_call.1} parent=5 // pred_check
        %p178 = pneg %p177
      $region22: #{tpu_custom_call.1} parent=5 // pred_check_branch
        %180 = sbr.rel (%p178) target = $region24
      $region23: #{tpu_custom_call.1} parent=5 // pred_region
        // Predicated region
        $region25: #{tpu_custom_call.1} parent=23 // pred_check
          %p181 = pneg %p50
        $region26: #{tpu_custom_call.1} parent=23 // pred_check_branch
          %183 = sbr.rel (%p181) target = $region28
        $region27: #{tpu_custom_call.1} parent=23 // pred_region
          %s184 = sand.u32 %s40, 1
          %s185 = scalar_lea.sflag [#allocation3], %s184
          %s186 = sand.u32 %s40, 1
          %s187 = smul.addr %s186, 8
          %s188 = scalar_lea.vmem [#allocation2], %s187
          %s190 = ssub.s32 128, 128
          %191 = vsyncadd %s185, %s190
          %s192 = sadd.s32 %s24, %s23
          %s193 = smul.addr %s192, 128
          %s194 = scalar_lea.hbm %s0, %s193
          %s196 = sshll.u32 %s188, 4
          %s197 = int_to_ptr.vmem [resolvable:$true] %s196
          %199 = dma.hbm_to_vmem [thread:$0]  %s194, 128, %s197, %s185
        $region28: #{tpu_custom_call.1} parent=23 // pred_fallthru
          _
      $region24: #{tpu_custom_call.1} parent=5 // pred_fallthru
        _
      %p200 = scmp.le.s32.totalorder 1, %s16
      %p201 = scmp.lt.s32.totalorder %s16, 3
      %p202 = pnand %p200, %p201
      %p203 = pneg %p202
      // Predicated region
      $region29: #{tpu_custom_call.1} parent=5 // pred_check
        _
      $region30: #{tpu_custom_call.1} parent=5 // pred_check_branch
        %205 = sbr.rel (%p202) target = $region32
      $region31: #{tpu_custom_call.1} parent=5 // pred_region
        %s206 = ssub.s32 %s16, 1
        %s207 = sand.u32 %s43, 1
        %s208 = scalar_lea.sflag [#allocation3], %s207
        %s209 = sand.u32 %s43, 1
        %s210 = smul.addr %s209, 8
        %s211 = scalar_lea.vmem [#allocation2], %s210
        // Predicated region
        $region33: #{tpu_custom_call.1} parent=31 // pred_check
          %p212 = pneg %p56
        $region34: #{tpu_custom_call.1} parent=31 // pred_check_branch
          %214 = sbr.rel (%p212) target = $region36
        $region35: #{tpu_custom_call.1} parent=31 // pred_region
          %215 = dma.done %s208, 128
        $region36: #{tpu_custom_call.1} parent=31 // pred_fallthru
          _
        // Predicated region
        $region37: #{tpu_custom_call.1} parent=31 // pred_check
          %p216 = pneg %p82
        $region38: #{tpu_custom_call.1} parent=31 // pred_check_branch
          %218 = sbr.rel (%p216) target = $region40
        $region39: #{tpu_custom_call.1} parent=31 // pred_region
          %219 = dma.done [#allocation6], 128
        $region40: #{tpu_custom_call.1} parent=31 // pred_fallthru
          _
        // Predicated region
        $region41: #{tpu_custom_call.1} parent=31 // pred_check
          %p220 = pneg %p108
        $region42: #{tpu_custom_call.1} parent=31 // pred_check_branch
          %222 = sbr.rel (%p220) target = $region44
        $region43: #{tpu_custom_call.1} parent=31 // pred_region
          %223 = dma.done [#allocation6], 128
        $region44: #{tpu_custom_call.1} parent=31 // pred_fallthru
          _
        %s224 = sand.u32 %s43, 1
        %s225 = scalar_lea.sflag [#allocation3], %s224
        %s226 = sand.u32 %s43, 1
        %s227 = smul.addr %s226, 8
        %s228 = scalar_lea.vmem [#allocation2], %s227
        %p229 = pneg %p56
        %p230 = pneg %p53
        %p231 = pneg %p82
        %p232 = pneg %p79
        %p233 = pneg %p108
        %p234 = pneg %p105
        %p235 = pneg %p136
        %p236 = pneg %p133
        %s237 = sand.u32 %s123, 1
        %s238 = scalar_lea.sflag [#allocation4], %s237
        %s239 = sand.u32 %s123, 1
        %s240 = smul.addr %s239, 8
        %s241 = scalar_lea.vmem [#allocation8], %s240
        %v242 = vld [vmem:[%s211] sm:$0xff]
        %v243 = vld [vmem:[#allocation5] sm:$0xff]
        %v244 = vld [vmem:[#allocation7] sm:$0xff]
        %246 = vrot.lane.b32.xlu0 %v243, 32
        %v247 = vpop.permute.xlu0 %246
        %249 = vrot.lane.b32.xlu0 %v243, 64
        %v250 = vpop.permute.xlu0 %249
        %252 = vrot.lane.b32.xlu0 %v243, 96
        %v253 = vpop.permute.xlu0 %252
        %vm255 = vcmask 261120
        %v256 = vsel %vm255, %v243, %v247
        %vm257 = vcmask 523264
        %v258 = vsel %vm257, %v256, %v250
        %vm259 = vcmask 785408
        %v260 = vsel %vm259, %v258, %v253
        %262 = vrot.lane.b32.xlu0 %v244, 32
        %v263 = vpop.permute.xlu0 %262
        %265 = vrot.lane.b32.xlu0 %v244, 64
        %v266 = vpop.permute.xlu0 %265
        %268 = vrot.lane.b32.xlu0 %v244, 96
        %v269 = vpop.permute.xlu0 %268
        %v271 = vsel %vm255, %v244, %v263
        %v272 = vsel %vm257, %v271, %v266
        %v273 = vsel %vm259, %v272, %v269
        %v274 = vlaneseq
        %v275 = vand.u32 %v274, 127
        %v276 = vand.u32 %v275, 1
        %vm277 = vcmp.eq.s32.totalorder %v276, 0
        %279 = vrot.lane.b32.xlu0 %v242, 127
        %v280 = vpop.permute.xlu0 %279
        %282 = vrot.lane.b32.xlu0 %v242, 1
        %v283 = vpop.permute.xlu0 %282
        %v285 = vsel %vm277, 1, 0
        %vm286 = vcmp.eq.s32.totalorder %v285, 1
        %v287 = vsel %vm286, %v280, %v283
        %v288 = vmul.f32 %v242, %v260
        %v289 = vmul.f32 %v287, %v273
        %v290 = vadd.f32 %v288, %v289
        %291 = vst [vmem:[%s241] sm:$0xff] %v290
        %s292 = sand.u32 %s123, 1
        %s293 = scalar_lea.sflag [#allocation4], %s292
        %s294 = sand.u32 %s123, 1
        %s295 = smul.addr %s294, 8
        %s296 = scalar_lea.vmem [#allocation8], %s295
        // Predicated region
        $region45: #{tpu_custom_call.1} parent=31 // pred_check
          %p297 = pneg %p133
        $region46: #{tpu_custom_call.1} parent=31 // pred_check_branch
          %299 = sbr.rel (%p297) target = $region48
        $region47: #{tpu_custom_call.1} parent=31 // pred_region
          %s301 = ssub.s32 128, 128
          %302 = vsyncadd %s293, %s301
          %s303 = sadd.s32 %s26, %s25
          %s304 = smul.addr %s303, 128
          %s305 = scalar_lea.hbm %s3, %s304
          %s307 = sshll.u32 %s296, 4
          %s308 = int_to_ptr.vmem [resolvable:$true] %s307
          %310 = dma.vmem_to_hbm [thread:$0]  %s308, 128, %s305, %s293
        $region48: #{tpu_custom_call.1} parent=31 // pred_fallthru
          _
      $region32: #{tpu_custom_call.1} parent=5 // pred_fallthru
        _
      %p311 = scmp.le.s32.totalorder 2, %s16
      // Predicated region
      $region49: #{tpu_custom_call.1} parent=5 // pred_check
        %p312 = pneg %p311
      $region50: #{tpu_custom_call.1} parent=5 // pred_check_branch
        %314 = sbr.rel (%p312) target = $region52
      $region51: #{tpu_custom_call.1} parent=5 // pred_region
        %s315 = ssub.s32 %s16, 2
        // Predicated region
        $region53: #{tpu_custom_call.1} parent=51 // pred_check
          %p316 = pneg %p139
        $region54: #{tpu_custom_call.1} parent=51 // pred_check_branch
          %318 = sbr.rel (%p316) target = $region56
        $region55: #{tpu_custom_call.1} parent=51 // pred_region
          %s319 = sand.u32 %s124, 1
          %s320 = scalar_lea.sflag [#allocation4], %s319
          %s321 = sand.u32 %s124, 1
          %s322 = smul.addr %s321, 8
          %s323 = scalar_lea.vmem [#allocation8], %s322
          %324 = dma.done %s320, 128
        $region56: #{tpu_custom_call.1} parent=51 // pred_fallthru
          _
      $region52: #{tpu_custom_call.1} parent=5 // pred_fallthru
        _
    $region6: #{tpu_custom_call.1} parent=1 // loop_footer
      %s20 = sadd.s32 1, %s16
    $region7: #{tpu_custom_call.1} parent=1 // loop_footer_branch
      %15 = sbr.rel target = $region3
    $region8: #{tpu_custom_call.1} parent=1 // loop_exit
      _
    %325 = vsyncpa [#allocation3], 1
    %s326 = scalar_lea.sflag [#allocation3], 1
    %327 = vsyncpa %s326, 1
    %328 = vsyncpa [#allocation6], 1
    %329 = vsyncpa [#allocation4], 1
    %s330 = scalar_lea.sflag [#allocation4], 1
    %331 = vsyncpa %s330, 1

</llo_original>
